<compile_context>
chip_gen: v7x
topology: tpu7x:2x2x1
jax: 0.10.0
libtpu: 0.0.40
codegen_flags: <defaults>
</compile_context>

<pallas_src>
import functools

import jax
import jax.numpy as jnp
from jax.experimental import pallas as pl
from jax.experimental.pallas import tpu as pltpu


def _round_up(x, m):
    return ((x + m - 1) // m) * m


def _cat_slice_cat_kernel(x1_ref, x2_ref, out_ref, *, C1, C2):
    # Output channel layout: [ x1 (C1) | x2 (C2) | v4 (C2) ],
    # where v4 = cat([x1, x2], channel)[:, :C2].
    x1 = x1_ref[...]          # loaded once; reused for the duplicated segment
    x2 = x2_ref[...]
    m = min(C1, C2)
    parts = [x1, x2, x1[:, :m, :]]
    if C2 > C1:
        # tail of v4 comes from the head of x2 (still from VMEM, no HBM re-read)
        parts.append(x2[:, :C2 - C1, :])
    # Assemble the full block value once and issue a single lane-dense store.
    out_ref[...] = jnp.concatenate(parts, axis=1)


def cat_slice_cat(x1, x2, *, vmem_budget_bytes=16 * 1024 * 1024):
    """x1: (N, C1, H, W), x2: (N, C2, H, W) -> (N, C1 + 2*C2, H, W)."""
    N, C1, H, W = x1.shape
    N2, C2, H2, W2 = x2.shape
    assert (N, H, W) == (N2, H2, W2), "all dims except channel must match"

    # torch.cat type-promotes; mirror that explicitly.
    dtype = jnp.promote_types(x1.dtype, x2.dtype)
    x1 = x1.astype(dtype)
    x2 = x2.astype(dtype)

    HW = H * W
    Cout = C1 + 2 * C2
    itemsize = jnp.dtype(dtype).itemsize
    sublane = 32 // itemsize                     # 8 (f32) / 16 (bf16) / 32 (i8)

    # Padded-row accounting: channel dims round to the sublane multiple,
    # lane dims to 128, and every operand is double-buffered.
    padded_rows = (_round_up(C1, sublane) + _round_up(C2, sublane)
                   + _round_up(Cout, sublane))

    x1f = x1.reshape(N, C1, HW)
    x2f = x2.reshape(N, C2, HW)
    kernel = functools.partial(_cat_slice_cat_kernel, C1=C1, C2=C2)

    # --- Small-problem fast path: whole padded problem fits in VMEM -> one
    # grid step, avoiding per-step grid overhead that dominates tiny inputs.
    total_bytes = 2 * N * padded_rows * _round_up(HW, 128) * itemsize
    if total_bytes <= vmem_budget_bytes:
        out = pl.pallas_call(
            kernel,
            out_shape=jax.ShapeDtypeStruct((N, Cout, HW), dtype),
            grid=(1,),
            in_specs=[
                pl.BlockSpec((N, C1, HW), lambda i: (0, 0, 0)),
                pl.BlockSpec((N, C2, HW), lambda i: (0, 0, 0)),
            ],
            out_specs=pl.BlockSpec((N, Cout, HW), lambda i: (0, 0, 0)),
            compiler_params=pltpu.CompilerParams(
                dimension_semantics=("arbitrary",),
                vmem_limit_bytes=total_bytes + (8 << 20)),
        )(x1f, x2f)
        return out.reshape(N, Cout, H, W)

    # --- Tiled path: grid = (N, cdiv(HW, T)), T a multiple of 128. ---
    per_lane_bytes = 2 * padded_rows * itemsize
    t_cap = max(128, (vmem_budget_bytes // per_lane_bytes // 128) * 128)
    if HW <= t_cap:
        T = HW                    # full-extent lane block (always legal, fits)
    else:
        T = t_cap                 # 128-multiple; ragged last block is legal
    num_tiles = pl.cdiv(HW, T)
    working_set = 2 * padded_rows * _round_up(T, 128) * itemsize

    out = pl.pallas_call(
        kernel,
        out_shape=jax.ShapeDtypeStruct((N, Cout, HW), dtype),
        grid=(N, num_tiles),
        in_specs=[
            pl.BlockSpec((1, C1, T), lambda n, t: (n, 0, t)),
            pl.BlockSpec((1, C2, T), lambda n, t: (n, 0, t)),
        ],
        out_specs=pl.BlockSpec((1, Cout, T), lambda n, t: (n, 0, t)),
        compiler_params=pltpu.CompilerParams(
            dimension_semantics=("parallel", "parallel"),
            vmem_limit_bytes=working_set + (8 << 20)),
    )(x1f, x2f)
    return out.reshape(N, Cout, H, W)


def _reference(x1, x2):
    dtype = jnp.promote_types(x1.dtype, x2.dtype)
    x1 = x1.astype(dtype)
    x2 = x2.astype(dtype)
    v2 = jnp.concatenate([x1, x2], axis=1)
    v3 = v2[:, 0:9223372036854775807]
    v4 = v3[:, 0:x2.shape[1]]
    return jnp.concatenate([v2, v4], axis=1)


if __name__ == "__main__":
    key = jax.random.PRNGKey(0)
    k1, k2 = jax.random.split(key)
    # small shapes consistent with the forward pass (concat along channel dim)
    x1 = jax.random.normal(k1, (2, 3, 16, 16), dtype=jnp.float32)
    x2 = jax.random.normal(k2, (2, 4, 16, 16), dtype=jnp.float32)

    out = cat_slice_cat(x1, x2)
    out = jax.block_until_ready(out)

    ref = _reference(x1, x2)
    assert out.shape == ref.shape, (out.shape, ref.shape)
    assert jnp.allclose(out, ref), "mismatch vs reference"

    # Also exercise the tiled (ragged last block) path with a tiny budget so
    # both code paths are validated on-device.
    out2 = cat_slice_cat(x1, x2, vmem_budget_bytes=16 * 1024)
    out2 = jax.block_until_ready(out2)
    assert jnp.allclose(out2, ref), "mismatch vs reference (tiled path)"

    print("KERNEL_OK")
</pallas_src>

<mosaic_0001>
module attributes {stable_mosaic.version = 11 : i64} {
  func.func @_cat_slice_cat_kernel(%arg0: i32, %arg1: memref<2x3x256xf32, #tpu.memory_space<vmem>>, %arg2: memref<2x4x256xf32, #tpu.memory_space<vmem>>, %arg3: memref<2x11x256xf32, #tpu.memory_space<vmem>>) attributes {dimension_semantics = [#tpu.dimension_semantics<arbitrary>], iteration_bounds = array<i64: 1>, scalar_prefetch = 0 : i64, scratch_operands = 0 : i64, tpu.core_type = #tpu.core_type<tc>, window_params = [{pipeline_mode = #tpu.pipeline_mode<synchronous>, transform_indices = @transform_0, window_bounds = array<i64: 2, 3, 256>}, {pipeline_mode = #tpu.pipeline_mode<synchronous>, transform_indices = @transform_1, window_bounds = array<i64: 2, 4, 256>}, {pipeline_mode = #tpu.pipeline_mode<synchronous>, transform_indices = @transform_2, window_bounds = array<i64: 2, 11, 256>}]} {
    %c0 = arith.constant 0 : index
    %c0_0 = arith.constant 0 : index
    %c0_1 = arith.constant 0 : index
    %0 = vector.load %arg1[%c0, %c0_0, %c0_1] : memref<2x3x256xf32, #tpu.memory_space<vmem>>, vector<2x3x256xf32>
    %c0_2 = arith.constant 0 : index
    %c0_3 = arith.constant 0 : index
    %c0_4 = arith.constant 0 : index
    %1 = vector.load %arg2[%c0_2, %c0_3, %c0_4] : memref<2x4x256xf32, #tpu.memory_space<vmem>>, vector<2x4x256xf32>
    %2 = vector.extract_strided_slice %1 {offsets = [0, 0, 0], sizes = [2, 1, 256], strides = [1, 1, 1]} : vector<2x4x256xf32> to vector<2x1x256xf32>
    %3 = tpu.concatenate %0, %1, %0, %2 in 1 : vector<2x3x256xf32>, vector<2x4x256xf32>, vector<2x3x256xf32>, vector<2x1x256xf32> -> vector<2x11x256xf32>
    %c0_5 = arith.constant 0 : index
    %c0_6 = arith.constant 0 : index
    %c0_7 = arith.constant 0 : index
    %4 = vector.load %arg3[%c0_5, %c0_6, %c0_7] : memref<2x11x256xf32, #tpu.memory_space<vmem>>, vector<2x11x256xf32>
    tpu.vector_store %arg3[%c0_5, %c0_6, %c0_7], %3 {strides = array<i32>} : memref<2x11x256xf32, #tpu.memory_space<vmem>>, vector<2x11x256xf32>,
    return
  }
  func.func @transform_0(%arg0: i32) -> (i32, i32, i32) {
    %c0_i32 = arith.constant 0 : i32
    %c0_i32_0 = arith.constant 0 : i32
    %c0_i32_1 = arith.constant 0 : i32
    %c0_i32_2 = arith.constant 0 : i32
    return %c0_i32, %c0_i32_0, %c0_i32_1 : i32, i32, i32
  }
  func.func @transform_1(%arg0: i32) -> (i32, i32, i32) {
    %c0_i32 = arith.constant 0 : i32
    %c0_i32_0 = arith.constant 0 : i32
    %c0_i32_1 = arith.constant 0 : i32
    %c0_i32_2 = arith.constant 0 : i32
    return %c0_i32, %c0_i32_0, %c0_i32_1 : i32, i32, i32
  }
  func.func @transform_2(%arg0: i32) -> (i32, i32, i32) {
    %c0_i32 = arith.constant 0 : i32
    %c0_i32_0 = arith.constant 0 : i32
    %c0_i32_1 = arith.constant 0 : i32
    %c0_i32_2 = arith.constant 0 : i32
    return %c0_i32, %c0_i32_0, %c0_i32_1 : i32, i32, i32
  }
}

</mosaic_0001>

<llo_original>
// kernel: tpu_custom_call.1
$region0: #{tpu_custom_call.1}
  #allocation0 [shape = 'u32[]', space=smem, size = 0x4, offset = 0x4, fixed_abs, tag = 'smem constant byte address 0x4 - core index']
  #allocation1 [shape = 'u32[144,128]{1,0:T(1,128)}', space=vmem, size = 0x12000, scoped, tag = 'internal scratch']
  %s0 = inlined_call_operand.vmem [shape: f32[2,3,256], index: 0, kind: input, shape index: {}]
  %s1 = inlined_call_operand.vmem [shape: f32[2,4,256], index: 1, kind: input, shape index: {}]
  %s2 = inlined_call_operand.vmem [shape: f32[2,11,256], index: 2, kind: output, shape index: {}]
  %s3 = sld [smem:[#allocation0]]
  $region18: #{tpu_custom_call.1} parent=0
    _
  %s5 = ssub.s32 1, %s3
  %s6 = scalar_select 0, %s5, %s3
  // Predicated region
  $region2: #{tpu_custom_call.1} parent=0 // pred_check
    _
  $region3: #{tpu_custom_call.1} parent=0 // pred_check_branch
    %8 = sbr.rel (0) target = $region5
  $region4: #{tpu_custom_call.1} parent=0 // pred_region
    _
  $region5: #{tpu_custom_call.1} parent=0 // pred_fallthru
    _
  // Predicated region
  $region6: #{tpu_custom_call.1} parent=0 // pred_check
    _
  $region7: #{tpu_custom_call.1} parent=0 // pred_check_branch
    %10 = sbr.rel (0) target = $region9
  $region8: #{tpu_custom_call.1} parent=0 // pred_region
    _
  $region9: #{tpu_custom_call.1} parent=0 // pred_fallthru
    _
  %v11 = vld [vmem:[%s0] sm:$0x77]
  %v12 = vld [vmem:[%s0 + $0x8] sm:$0x77]
  %v13 = vld [vmem:[%s1] sm:$0xff]
  %v14 = vld [vmem:[%s1 + $0x8] sm:$0xff]
  %v17 = vcombine.high %v11, %v11
  %v18 = vcombine.high %v12, %v12
  %v23 = vcombine.high %v13, %v13
  %v24 = vcombine.high %v14, %v14
  %v25 = vrot.slane %v13, 5
  %v26 = vrot.slane %v23, 5
  %v27 = vrot.slane %v14, 5
  %v28 = vrot.slane %v24, 5
  %v33 = vrot.slane %v11, 1
  %v34 = vrot.slane %v17, 1
  %v35 = vrot.slane %v12, 1
  %v36 = vrot.slane %v18, 1
  %v41 = vlaneseq
  %v42 = vshrl.u32 %v41, 7
  %v43 = vsub.s32 0, %v42
  %v44 = vrot.slane %v13, %v43
  %v45 = vlaneseq
  %v46 = vshrl.u32 %v45, 7
  %v47 = vsub.s32 4, %v46
  %v48 = vrot.slane %v13, %v47
  %v49 = vlaneseq
  %v50 = vshrl.u32 %v49, 7
  %v51 = vsub.s32 0, %v50
  %v52 = vrot.slane %v14, %v51
  %v53 = vlaneseq
  %v54 = vshrl.u32 %v53, 7
  %v55 = vsub.s32 4, %v54
  %v56 = vrot.slane %v14, %v55
  %vm61 = vcmask 1042432
  %v62 = vsel %vm61, %v11, %v25
  %v63 = vsel %vm61, %v17, %v26
  %v64 = vsel %vm61, %v12, %v27
  %v65 = vsel %vm61, %v18, %v28
  %vm66 = vcmask 1046528
  %v67 = vsel %vm66, %v62, %v33
  %v68 = vsel %vm66, %v63, %v34
  %v69 = vsel %vm66, %v64, %v35
  %v70 = vsel %vm66, %v65, %v36
  %vm71 = vcmask 1041408
  %v72 = vsel %vm71, %v33, %v44
  %v73 = vsel %vm71, %v34, %v48
  %v74 = vsel %vm71, %v35, %v52
  %v75 = vsel %vm71, %v36, %v56
  %76 = vst [vmem:[%s2] sm:$0xff] %v67
  %77 = vst [vmem:[%s2 + $0x8] sm:$0xff] %v68
  %78 = vst [vmem:[%s2 + $0x10] sm:$0x7] %v72
  %79 = vst [vmem:[%s2 + $0x18] sm:$0x7] %v73
  %80 = vst [vmem:[%s2 + $0x20] sm:$0xff] %v69
  %81 = vst [vmem:[%s2 + $0x28] sm:$0xff] %v70
  %82 = vst [vmem:[%s2 + $0x30] sm:$0x7] %v74
  %83 = vst [vmem:[%s2 + $0x38] sm:$0x7] %v75
  // Predicated region
  $region10: #{tpu_custom_call.1} parent=0 // pred_check
    _
  $region11: #{tpu_custom_call.1} parent=0 // pred_check_branch
    %85 = sbr.rel (0) target = $region13
  $region12: #{tpu_custom_call.1} parent=0 // pred_region
    _
  $region13: #{tpu_custom_call.1} parent=0 // pred_fallthru
    _
  // Predicated region
  $region14: #{tpu_custom_call.1} parent=0 // pred_check
    _
  $region15: #{tpu_custom_call.1} parent=0 // pred_check_branch
    %87 = sbr.rel (0) target = $region17
  $region16: #{tpu_custom_call.1} parent=0 // pred_region
    _
  $region17: #{tpu_custom_call.1} parent=0 // pred_fallthru
    _

</llo_original>
